<compile_context>
chip_gen: v6e
topology: v6e:2x2x1
jax: 0.10.0
libtpu: 0.0.40
codegen_flags: <defaults>
</compile_context>

<pallas_src>
import math

import jax
import jax.numpy as jnp
from jax import lax
from jax.experimental import pallas as pl
from jax.experimental.pallas import tpu as pltpu

IN_FEATURES = 18
OUT_FEATURES = 9
TM_MAX_DEFAULT = 8192  # max batch rows per grid step


def actor_kernel(x_ref, w_ref, b_ref, o_ref):
    # x_ref: (tm, 18) VMEM   (natural layout: batch on sublanes)
    # w_ref: (9, 18)  VMEM   (PyTorch (out,in) layout, resident across steps)
    # b_ref: (1, 9)   VMEM   (resident across steps)
    # o_ref: (tm, 9)  VMEM   (softmax probabilities, natural layout)
    x = x_ref[...].astype(jnp.float32)
    w = w_ref[...].astype(jnp.float32)
    b = b_ref[...].astype(jnp.float32)

    # logits = x @ w.T + b  -> (tm, 9), f32 accumulation.
    logits = lax.dot_general(
        x, w, (((1,), (1,)), ((), ())), preferred_element_type=jnp.float32
    ) + b

    # Numerically-stable softmax over the 9 classes (lane axis).
    m = jnp.max(logits, axis=-1, keepdims=True)          # (tm, 1)
    e = jnp.exp(logits - m)
    denom = jnp.sum(e, axis=-1, keepdims=True)           # (tm, 1)
    inv = pl.reciprocal(denom, approx=False)             # exact (1e-5 tolerance)
    o_ref[...] = (e * inv).astype(o_ref.dtype)


def _choose_tile(batch, tm_max):
    """Balanced batch tile: multiple of 8, <= tm_max, even >=2 steps for B>=256."""
    tm_max = max(8, (tm_max // 8) * 8)
    n_steps = pl.cdiv(batch, tm_max)
    if batch >= 256:
        # Keep both v7x TensorCores busy (parallel grid axis), even step count.
        n_steps = max(n_steps, 2)
        n_steps += n_steps % 2
    tm = min(tm_max, pl.cdiv(pl.cdiv(batch, n_steps), 8) * 8)
    b_pad = pl.cdiv(batch, tm) * tm
    return tm, b_pad, b_pad // tm


def actor_forward(x, w, b, *, tm_max=TM_MAX_DEFAULT):
    """x: (B, 18), w: (9, 18) [PyTorch (out,in) layout], b: (9,)  ->  (B, 9)."""
    B = x.shape[0]
    tm, b_pad, grid = _choose_tile(B, tm_max)

    # Only wrapper-side data movement: zero-pad batch rows when B % tm != 0.
    x_in = x if b_pad == B else jnp.pad(x, ((0, b_pad - B), (0, 0)))
    b2d = b.reshape(1, OUT_FEATURES)

    out = pl.pallas_call(
        actor_kernel,
        out_shape=jax.ShapeDtypeStruct((b_pad, OUT_FEATURES), jnp.float32),
        grid_spec=pltpu.PrefetchScalarGridSpec(
            num_scalar_prefetch=0,
            grid=(grid,),
            in_specs=[
                # (tm, 18): sublane dim is a multiple of 8, lane dim equals the
                # full array dim -> satisfies the (8,128) block constraint.
                pl.BlockSpec((tm, IN_FEATURES), lambda i: (i, 0)),
                # Weight / bias blocks equal the full arrays; constant
                # index_map keeps them resident across grid steps.
                pl.BlockSpec((OUT_FEATURES, IN_FEATURES), lambda i: (0, 0)),
                pl.BlockSpec((1, OUT_FEATURES), lambda i: (0, 0)),
            ],
            out_specs=pl.BlockSpec((tm, OUT_FEATURES), lambda i: (i, 0)),
        ),
        compiler_params=pltpu.CompilerParams(
            # Batch tiles are independent -> parallel (megacore sharding on v7x).
            dimension_semantics=("parallel",),
            # Double-buffered (tm,18)+(tm,9) f32 blocks lane-pad to 128, so the
            # real footprint at tm=8192 is ~16 MiB; raise above the v5e 16 MiB
            # scoped default while staying well inside physical VMEM everywhere.
            vmem_limit_bytes=32 * 1024 * 1024,
        ),
    )(x_in, w, b2d)

    return out if b_pad == B else out[:B]


def init_params(key):
    """nn.Linear-style init: U(-1/sqrt(fan_in), +1/sqrt(fan_in)), (out,in) layout."""
    kw, kb = jax.random.split(key)
    bound = 1.0 / math.sqrt(IN_FEATURES)
    w = jax.random.uniform(
        kw, (OUT_FEATURES, IN_FEATURES), jnp.float32, -bound, bound
    )
    b = jax.random.uniform(kb, (OUT_FEATURES,), jnp.float32, -bound, bound)
    return w, b


def _reference(x, w, b):
    return jax.nn.softmax(x.astype(jnp.float32) @ w.T + b, axis=-1)


if __name__ == "__main__":
    key = jax.random.PRNGKey(0)
    kx, kx2, kp = jax.random.split(key, 3)
    w, b = init_params(kp)

    # Small batch (single tile, padded to a multiple of 8).
    B = 8
    x = jax.random.normal(kx, (B, IN_FEATURES), jnp.float32)
    out = jax.block_until_ready(actor_forward(x, w, b))
    ref = _reference(x, w, b)
    assert out.shape == (B, OUT_FEATURES)
    assert jnp.allclose(out, ref, atol=1e-5, rtol=1e-5)
    assert jnp.allclose(jnp.sum(out, axis=-1), jnp.ones((B,)), atol=1e-5)

    # Batch not divisible by the tile: exercises balancing, padding and a
    # multi-step (even) grid.
    B2 = 300
    x2 = jax.random.normal(kx2, (B2, IN_FEATURES), jnp.float32)
    out2 = jax.block_until_ready(actor_forward(x2, w, b, tm_max=128))
    ref2 = _reference(x2, w, b)
    assert out2.shape == (B2, OUT_FEATURES)
    assert jnp.allclose(out2, ref2, atol=1e-5, rtol=1e-5)
    assert jnp.allclose(jnp.sum(out2, axis=-1), jnp.ones((B2,)), atol=1e-5)

    print("KERNEL_OK")
</pallas_src>

<mosaic_0001>
module attributes {stable_mosaic.version = 11 : i64} {
  func.func @actor_kernel(%arg0: i32, %arg1: memref<8x18xf32, #tpu.memory_space<vmem>>, %arg2: memref<9x18xf32, #tpu.memory_space<vmem>>, %arg3: memref<1x9xf32, #tpu.memory_space<vmem>>, %arg4: memref<8x9xf32, #tpu.memory_space<vmem>>) attributes {dimension_semantics = [#tpu.dimension_semantics<parallel>], iteration_bounds = array<i64: 1>, scalar_prefetch = 0 : i64, scratch_operands = 0 : i64, tpu.core_type = #tpu.core_type<tc>, window_params = [{transform_indices = @transform_0, window_bounds = array<i64: 8, 18>}, {pipeline_mode = #tpu.pipeline_mode<synchronous>, transform_indices = @transform_1, window_bounds = array<i64: 9, 18>}, {pipeline_mode = #tpu.pipeline_mode<synchronous>, transform_indices = @transform_2, window_bounds = array<i64: 1, 9>}, {transform_indices = @transform_3, window_bounds = array<i64: 8, 9>}]} {
    %c0 = arith.constant 0 : index
    %c0_0 = arith.constant 0 : index
    %0 = vector.load %arg1[%c0, %c0_0] : memref<8x18xf32, #tpu.memory_space<vmem>>, vector<8x18xf32>
    %c0_1 = arith.constant 0 : index
    %c0_2 = arith.constant 0 : index
    %1 = vector.load %arg2[%c0_1, %c0_2] : memref<9x18xf32, #tpu.memory_space<vmem>>, vector<9x18xf32>
    %c0_3 = arith.constant 0 : index
    %c0_4 = arith.constant 0 : index
    %2 = vector.load %arg3[%c0_3, %c0_4] : memref<1x9xf32, #tpu.memory_space<vmem>>, vector<1x9xf32>
    %cst = arith.constant dense<0.000000e+00> : vector<8x9xf32>
    %3 = tpu.matmul %0, %1, %cst {dimension_numbers = #tpu.dot_dimension_numbers<[1], [1], [0], [0], [0, 0, 1, 0], [], []>} : vector<8x18xf32>, vector<9x18xf32>, vector<8x9xf32> -> vector<8x9xf32>
    %4 = vector.broadcast %2 : vector<1x9xf32> to vector<8x9xf32>
    %5 = arith.addf %3, %4 : vector<8x9xf32>
    %cst_5 = arith.constant dense<0xFF800000> : vector<8xf32>
    %6 = vector.multi_reduction <maximumf>, %5, %cst_5 [1] : vector<8x9xf32> to vector<8xf32>
    %7 = vector.shape_cast %6 : vector<8xf32> to vector<8x1xf32>
    %8 = vector.broadcast %7 : vector<8x1xf32> to vector<8x9xf32>
    %9 = arith.subf %5, %8 : vector<8x9xf32>
    %10 = math.exp %9 : vector<8x9xf32>
    %cst_6 = arith.constant dense<0.000000e+00> : vector<8xf32>
    %11 = vector.multi_reduction <add>, %10, %cst_6 [1] : vector<8x9xf32> to vector<8xf32>
    %12 = vector.shape_cast %11 : vector<8xf32> to vector<8x1xf32>
    %13 = tpu.reciprocal %12 : vector<8x1xf32> -> vector<8x1xf32>
    %14 = vector.broadcast %13 : vector<8x1xf32> to vector<8x9xf32>
    %15 = arith.mulf %10, %14 : vector<8x9xf32>
    %c0_7 = arith.constant 0 : index
    %c0_8 = arith.constant 0 : index
    %16 = vector.load %arg4[%c0_7, %c0_8] : memref<8x9xf32, #tpu.memory_space<vmem>>, vector<8x9xf32>
    tpu.vector_store %arg4[%c0_7, %c0_8], %15 {strides = array<i32>} : memref<8x9xf32, #tpu.memory_space<vmem>>, vector<8x9xf32>,
    return
  }
  func.func @transform_0(%arg0: i32) -> (i32, i32) {
    %c0_i32 = arith.constant 0 : i32
    %c0_i32_0 = arith.constant 0 : i32
    return %arg0, %c0_i32 : i32, i32
  }
  func.func @transform_1(%arg0: i32) -> (i32, i32) {
    %c0_i32 = arith.constant 0 : i32
    %c0_i32_0 = arith.constant 0 : i32
    %c0_i32_1 = arith.constant 0 : i32
    return %c0_i32, %c0_i32_0 : i32, i32
  }
  func.func @transform_2(%arg0: i32) -> (i32, i32) {
    %c0_i32 = arith.constant 0 : i32
    %c0_i32_0 = arith.constant 0 : i32
    %c0_i32_1 = arith.constant 0 : i32
    return %c0_i32, %c0_i32_0 : i32, i32
  }
  func.func @transform_3(%arg0: i32) -> (i32, i32) {
    %c0_i32 = arith.constant 0 : i32
    %c0_i32_0 = arith.constant 0 : i32
    return %arg0, %c0_i32 : i32, i32
  }
}

</mosaic_0001>

<llo_original>
// kernel: tpu_custom_call.1
$region0: #{tpu_custom_call.1}
  #allocation0 [shape = 'u32[]', space=smem, size = 0x4, offset = 0x4, fixed_abs, tag = 'smem constant byte address 0x4 - core index']
  #allocation1 [shape = 'u32[144,128]{1,0:T(1,128)}', space=vmem, size = 0x12000, scoped, tag = 'internal scratch']
  %s0 = inlined_call_operand.hbm [shape: f32[8,18], index: 0, kind: input, shape index: {}]
  %s1 = inlined_call_operand.hbm [shape: f32[9,18], index: 1, kind: input, shape index: {}]
  %s2 = inlined_call_operand.vmem [shape: f32[1,9], index: 2, kind: input, shape index: {}]
  %s3 = inlined_call_operand.hbm [shape: f32[8,9], index: 3, kind: output, shape index: {}]
  %s4 = sld [smem:[#allocation0]]
  $region30: #{tpu_custom_call.1} parent=0
    _
  %s6 = ssub.s32 1, %s4
  %s7 = scalar_select 0, %s6, %s4
  $region1: #{tpu_custom_call.1} parent=0
    #allocation2 [shape = 'u8[4096]{0}', space=vmem, size = 0x1000, scoped, tag = 'input window, operand 0, single buffered']
    #allocation3 [shape = 's32[1]{0}', space=sflag, size = 0x4, scoped, tag = 'scoped memory for tpu_custom_call.1']
    #allocation4 [shape = 's32[1]{0}', space=sflag, size = 0x4, scoped, tag = 'scoped memory for tpu_custom_call.1']
    #allocation5 [shape = 'u8[8192]{0}', space=vmem, size = 0x2000, scoped, tag = 'input window, operand 1, single buffered']
    #allocation6 [shape = 's32[1]{0}', space=sflag, size = 0x4, scoped, tag = 'scoped memory for tpu_custom_call.1']
    #allocation7 [shape = 'u8[4096]{0}', space=vmem, size = 0x1000, scoped, tag = 'output window, operand 0, single buffered']
    %8 = vsyncpa [#allocation3], 0
    %9 = vsyncpa [#allocation6], 0
    %10 = vsyncpa [#allocation4], 0
    // Predicated region
    $region2: #{tpu_custom_call.1} parent=1 // pred_check
      _
    $region3: #{tpu_custom_call.1} parent=1 // pred_check_branch
      %12 = sbr.rel (0) target = $region5
    $region4: #{tpu_custom_call.1} parent=1 // pred_region
      %s14 = ssub.s32 128, 128
      %15 = vsyncadd [#allocation3], %s14
      %s17 = sshll.u32 [#allocation2], 4
      %s18 = int_to_ptr.vmem [resolvable:$true] %s17
      %20 = dma.hbm_to_vmem [thread:$0]  %s0, 128, %s18, [#allocation3]
    $region5: #{tpu_custom_call.1} parent=1 // pred_fallthru
      _
    // Predicated region
    $region6: #{tpu_custom_call.1} parent=1 // pred_check
      _
    $region7: #{tpu_custom_call.1} parent=1 // pred_check_branch
      %22 = sbr.rel (0) target = $region9
    $region8: #{tpu_custom_call.1} parent=1 // pred_region
      %s24 = ssub.s32 256, 256
      %25 = vsyncadd [#allocation6], %s24
      %s26 = sshll.u32 [#allocation5], 4
      %s27 = int_to_ptr.vmem [resolvable:$true] %s26
      %32 = dma.hbm_to_vmem [thread:$0]  %s1, 256, %s27, [#allocation6], 128, 128, 8
    $region9: #{tpu_custom_call.1} parent=1 // pred_fallthru
      _
    // Predicated region
    $region10: #{tpu_custom_call.1} parent=1 // pred_check
      _
    $region11: #{tpu_custom_call.1} parent=1 // pred_check_branch
      %34 = sbr.rel (0) target = $region13
    $region12: #{tpu_custom_call.1} parent=1 // pred_region
      _
    $region13: #{tpu_custom_call.1} parent=1 // pred_fallthru
      _
    // Predicated region
    $region14: #{tpu_custom_call.1} parent=1 // pred_check
      _
    $region15: #{tpu_custom_call.1} parent=1 // pred_check_branch
      %36 = sbr.rel (0) target = $region17
    $region16: #{tpu_custom_call.1} parent=1 // pred_region
      %37 = dma.done [#allocation3], 128
    $region17: #{tpu_custom_call.1} parent=1 // pred_fallthru
      _
    // Predicated region
    $region18: #{tpu_custom_call.1} parent=1 // pred_check
      _
    $region19: #{tpu_custom_call.1} parent=1 // pred_check_branch
      %39 = sbr.rel (0) target = $region21
    $region20: #{tpu_custom_call.1} parent=1 // pred_region
      %40 = dma.done [#allocation6], 256
    $region21: #{tpu_custom_call.1} parent=1 // pred_fallthru
      _
    %v41 = vld [vmem:[#allocation2] sm:$0xff]
    %v42 = vld [vmem:[#allocation5] sm:$0xff]
    %v43 = vld [vmem:[#allocation5 + $0x8] sm:$0x1]
    %v44 = vld [vmem:[%s2] sm:$0x1]
    %v46 = vlaneseq
    %v47 = vshrl.u32 %v46, 7
    %v48 = vsub.s32 0, %v47
    %v49 = vrot.slane %v44, %v48
    %vm51 = vcmask 146432
    %v53 = vsel %vm51, %v41, 0
    %v56 = vsel %vm51, %v42, 0
    %v59 = vsel %vm51, %v43, 0
    %61 = vmatprep.subr.mxu0 0.0
    %62 = vmatpush1.xpose.msra.mxu0 0.0
    %63 = vmatprep.subr.mxu0 0.0
    %64 = vmatpush1.xpose.msra.mxu0 0.0
    %65 = vmatprep.subr.mxu0 0.0
    %66 = vmatpush1.xpose.msra.mxu0 0.0
    %67 = vmatprep.subr.mxu0 0.0
    %68 = vmatpush1.xpose.msra.mxu0 0.0
    %69 = vmatprep.subr.mxu0 0.0
    %70 = vmatpush1.xpose.msra.mxu0 0.0
    %71 = vmatprep.subr.mxu0 0.0
    %72 = vmatpush1.xpose.msra.mxu0 0.0
    %73 = vmatprep.subr.mxu0 0.0
    %74 = vmatpush1.xpose.msra.mxu0 0.0
    %75 = vmatprep.subr.mxu0 0.0
    %76 = vmatpush1.xpose.msra.mxu0 0.0
    %77 = vmatprep.subr.mxu0 0.0
    %78 = vmatpush1.xpose.msra.mxu0 0.0
    %79 = vmatprep.subr.mxu0 0.0
    %80 = vmatpush1.xpose.msra.mxu0 0.0
    %81 = vmatprep.subr.mxu0 0.0
    %82 = vmatpush1.xpose.msra.mxu0 0.0
    %83 = vmatprep.subr.mxu0 0.0
    %84 = vmatpush1.xpose.msra.mxu0 0.0
    %85 = vmatprep.subr.mxu0 0.0
    %86 = vmatpush1.xpose.msra.mxu0 0.0
    %87 = vmatprep.subr.mxu0 0.0
    %88 = vmatpush1.xpose.msra.mxu0 0.0
    %89 = vmatprep.subr.mxu0 0.0
    %90 = vmatpush1.xpose.msra.mxu0 %v59
    %91 = vmatprep.subr.mxu0 0.0
    %92 = vmatpush1.xpose.msra.mxu0 %v56
    %93 = vmatprep.subr.mxu0 0.0
    %94 = vmatpush2.xpose.msra.mxu0 0.0
    %95 = vmatprep.subr.mxu0 0.0
    %96 = vmatpush2.xpose.msra.mxu0 0.0
    %97 = vmatprep.subr.mxu0 0.0
    %98 = vmatpush2.xpose.msra.mxu0 0.0
    %99 = vmatprep.subr.mxu0 0.0
    %100 = vmatpush2.xpose.msra.mxu0 0.0
    %101 = vmatprep.subr.mxu0 0.0
    %102 = vmatpush2.xpose.msra.mxu0 0.0
    %103 = vmatprep.subr.mxu0 0.0
    %104 = vmatpush2.xpose.msra.mxu0 0.0
    %105 = vmatprep.subr.mxu0 0.0
    %106 = vmatpush2.xpose.msra.mxu0 0.0
    %107 = vmatprep.subr.mxu0 0.0
    %108 = vmatpush2.xpose.msra.mxu0 0.0
    %109 = vmatprep.subr.mxu0 0.0
    %110 = vmatpush2.xpose.msra.mxu0 0.0
    %111 = vmatprep.subr.mxu0 0.0
    %112 = vmatpush2.xpose.msra.mxu0 0.0
    %113 = vmatprep.subr.mxu0 0.0
    %114 = vmatpush2.xpose.msra.mxu0 0.0
    %115 = vmatprep.subr.mxu0 0.0
    %116 = vmatpush2.xpose.msra.mxu0 0.0
    %117 = vmatprep.subr.mxu0 0.0
    %118 = vmatpush2.xpose.msra.mxu0 0.0
    %119 = vmatprep.subr.mxu0 0.0
    %120 = vmatpush2.xpose.msra.mxu0 0.0
    %121 = vmatprep.subr.mxu0 0.0
    %122 = vmatpush2.xpose.msra.mxu0 0.0
    %123 = vmatprep.subr.mxu0 0.0
    %124 = vmatpush2.xpose.msra.mxu0 0.0
    %125 = vmatprep.mubr.f32.mxu0 0.0
    %126 = vmatmul.mubr.f32.gmra.mxu0 %v53
    %v127 = vpop.f32.mrf.mxu0
    %v128 = vadd.f32 %v49, %v127
    %v129 = vpop.f32.mrf.mxu0
    %130 = vdwg.mxu0
    %vm131 = vcmask 72704
    %v132 = vsel %vm131, %v128, -inf
    %133 = vmax.xlane.f32.xlu0 %v132
    %v134 = vpop.xlane.xlu0 %133
    %v135 = vsub.f32 %v128, %v134
    %v136 = vmul.f32 %v135, 1.442695
    %v137 = vpow.pop %v136
    %v138 = vsel %vm131, %v137, 0.0
    %139 = vadd.xlane.f32.xlu0 %v138
    %v140 = vpop.xlane.xlu0 %139
    %v141 = vrcp.pop %v140
    %v142 = vmul.f32 %v137, %v141
    %143 = vst.msk [vmem:[#allocation7] sm:$0xff] %vm131, %v142
    // Predicated region
    $region22: #{tpu_custom_call.1} parent=1 // pred_check
      _
    $region23: #{tpu_custom_call.1} parent=1 // pred_check_branch
      %145 = sbr.rel (0) target = $region25
    $region24: #{tpu_custom_call.1} parent=1 // pred_region
      %s147 = ssub.s32 128, 128
      %148 = vsyncadd [#allocation4], %s147
      %s150 = sshll.u32 [#allocation7], 4
      %s151 = int_to_ptr.vmem [resolvable:$true] %s150
      %153 = dma.vmem_to_hbm [thread:$0]  %s151, 128, %s3, [#allocation4]
    $region25: #{tpu_custom_call.1} parent=1 // pred_fallthru
      _
    // Predicated region
    $region26: #{tpu_custom_call.1} parent=1 // pred_check
      _
    $region27: #{tpu_custom_call.1} parent=1 // pred_check_branch
      %155 = sbr.rel (0) target = $region29
    $region28: #{tpu_custom_call.1} parent=1 // pred_region
      %156 = dma.done [#allocation4], 128
    $region29: #{tpu_custom_call.1} parent=1 // pred_fallthru
      _
    %157 = vsyncpa [#allocation3], 1
    %158 = vsyncpa [#allocation6], 1
    %159 = vsyncpa [#allocation4], 1

</llo_original>
